<compile_context>
chip_gen: v5e
topology: v5e:2x2
jax: 0.10.0
libtpu: 0.0.40
codegen_flags: <defaults>
</compile_context>

<pallas_src>
import functools

import jax
import jax.numpy as jnp
from jax.experimental import pallas as pl
from jax.experimental.pallas import tpu as pltpu


def _round_up(x, m):
    return ((x + m - 1) // m) * m


# ----------------------------------------------------------------------------
# Kernel 1:  Y = act(X @ W + bias)        (X, W in bf16, f32 accumulation)
#   - patch embed (16x16 s16 conv):  bias = conv bias, act = "none"
# ----------------------------------------------------------------------------
def _matmul_bias_kernel(x_ref, w_ref, bias_ref, o_ref, *, act):
    y = jnp.dot(x_ref[...], w_ref[...], preferred_element_type=jnp.float32)
    y = y + bias_ref[...]
    if act == "silu":
        y = y * jax.nn.sigmoid(y)
    elif act == "relu":
        y = jnp.maximum(y, 0.0)
    o_ref[...] = y.astype(o_ref.dtype)


def fused_matmul(x, w, bias, *, act="none", out_dtype=jnp.float32, tm=256):
    """x: [M, K], w: [K, N], bias: [N] -> [M, N] (out_dtype)."""
    M, K = x.shape
    K2, N = w.shape
    assert K == K2
    x = x.astype(jnp.bfloat16)
    w = w.astype(jnp.bfloat16)
    bias = bias.reshape(1, N).astype(jnp.float32)

    tm = min(tm, _round_up(M, 8))          # clamp tile to (padded) M at small shapes
    Mp = _round_up(M, tm)
    if Mp != M:                            # real SAM shapes are tile-aligned -> no pad
        x = jnp.pad(x, ((0, Mp - M), (0, 0)))

    out = pl.pallas_call(
        functools.partial(_matmul_bias_kernel, act=act),
        out_shape=jax.ShapeDtypeStruct((Mp, N), out_dtype),
        grid_spec=pltpu.PrefetchScalarGridSpec(
            num_scalar_prefetch=0,
            grid=(Mp // tm,),
            in_specs=[
                pl.BlockSpec((tm, K), lambda i: (i, 0)),   # X tile
                pl.BlockSpec((K, N), lambda i: (0, 0)),    # full weight (resident)
                pl.BlockSpec((1, N), lambda i: (0, 0)),    # per-channel bias
            ],
            out_specs=pl.BlockSpec((tm, N), lambda i: (i, 0)),
        ),
        compiler_params=pltpu.CompilerParams(dimension_semantics=("parallel",)),
    )(x, w, bias)
    return out if Mp == M else out[:M]


# ----------------------------------------------------------------------------
# Kernel 2:  Y = y + SiLU(y @ W2 + b2),  y = (sum_g X[g] @ W[g]) + shift
# 2-D grid reduction over the 12 focal slices (no 3072-wide concat in HBM),
# with the conv2d(256,256,1) + SiLU + residual refinement fused into the
# g == G-1 epilogue (the BasicConv2d output never round-trips to HBM).
# ----------------------------------------------------------------------------
def _grouped_matmul_residual_kernel(x_ref, w_ref, shift_ref, w2_ref, b2_ref,
                                    o_ref, acc_ref):
    g = pl.program_id(1)

    @pl.when(g == 0)
    def _():
        acc_ref[...] = jnp.zeros_like(acc_ref)

    acc_ref[...] += jnp.dot(x_ref[0], w_ref[0],
                            preferred_element_type=jnp.float32)

    @pl.when(g == pl.num_programs(1) - 1)
    def _():
        y = acc_ref[...] + shift_ref[...]          # BasicConv2d (BN-folded) output
        z = jnp.dot(y.astype(jnp.bfloat16), w2_ref[...],
                    preferred_element_type=jnp.float32) + b2_ref[...]
        z = z * jax.nn.sigmoid(z)                  # SiLU
        o_ref[...] = (y + z).astype(o_ref.dtype)   # drop_path(0) == identity residual


def grouped_conv1x1_residual(x_g, w_g, shift, w2, b2, *,
                             out_dtype=jnp.float32, tm=256):
    """x_g: [G, M, E], w_g: [G, E, N], shift: [N], w2: [N, N], b2: [N] -> [M, N]."""
    G, M, E = x_g.shape
    G2, E2, N = w_g.shape
    assert G == G2 and E == E2 and w2.shape == (N, N)
    x_g = x_g.astype(jnp.bfloat16)
    w_g = w_g.astype(jnp.bfloat16)
    w2 = w2.astype(jnp.bfloat16)
    shift = shift.reshape(1, N).astype(jnp.float32)
    b2 = b2.reshape(1, N).astype(jnp.float32)

    tm = min(tm, _round_up(M, 8))
    Mp = _round_up(M, tm)
    if Mp != M:
        x_g = jnp.pad(x_g, ((0, 0), (0, Mp - M), (0, 0)))

    out = pl.pallas_call(
        _grouped_matmul_residual_kernel,
        out_shape=jax.ShapeDtypeStruct((Mp, N), out_dtype),
        grid_spec=pltpu.PrefetchScalarGridSpec(
            num_scalar_prefetch=0,
            grid=(Mp // tm, G),
            in_specs=[
                pl.BlockSpec((1, tm, E), lambda i, g: (g, i, 0)),  # slice-g X tile
                pl.BlockSpec((1, E, N), lambda i, g: (g, 0, 0)),   # slice-g weight slab
                pl.BlockSpec((1, N), lambda i, g: (0, 0)),         # BN-folded shift
                pl.BlockSpec((N, N), lambda i, g: (0, 0)),         # conv2d weight
                pl.BlockSpec((1, N), lambda i, g: (0, 0)),         # conv2d bias
            ],
            out_specs=pl.BlockSpec((tm, N), lambda i, g: (i, 0)),  # resident across g
            scratch_shapes=[pltpu.VMEM((tm, N), jnp.float32)],
        ),
        compiler_params=pltpu.CompilerParams(
            dimension_semantics=("parallel", "arbitrary")),
    )(x_g, w_g, shift, w2, b2)
    return out if Mp == M else out[:M]


# ----------------------------------------------------------------------------
# Patch embedding: Conv2d(3, E, kernel=16, stride=16, padding=0)  (NCHW input)
# implemented as im2patch + Pallas matmul.  Output stays channels-last / flat.
# ----------------------------------------------------------------------------
def patch_embed(x_nchw, weight, bias, *, out_dtype=jnp.bfloat16):
    """x: [B,3,H,W]; weight: [E,3,16,16]; bias: [E] -> [B, (H/16)*(W/16), E]."""
    B, C, H, W = x_nchw.shape
    E = weight.shape[0]
    h, w = H // 16, W // 16
    patches = x_nchw.reshape(B, C, h, 16, w, 16).transpose(0, 2, 4, 1, 3, 5)
    patches = patches.reshape(B * h * w, C * 16 * 16)
    w_mat = weight.reshape(E, C * 16 * 16).T            # [K, E], (c, kh, kw) order
    out = fused_matmul(patches, w_mat, bias, act="none", out_dtype=out_dtype)
    return out.reshape(B, h * w, E)


# ----------------------------------------------------------------------------
# Model forward (implementable subset).  Activations are kept as flattened
# channels-last [M, C] tensors; the only NCHW conversion is the final output.
# ----------------------------------------------------------------------------
def model_forward(focal, all_f, params):
    B, C, H, W = focal.shape
    h, w = H // 16, W // 16
    E = params["patch_w"].shape[0]

    # patch embedding of the focal stream (self.patch / image_encoder.patch_embed)
    rgb_emb = patch_embed(focal, params["patch_w"], params["patch_b"],
                          out_dtype=jnp.bfloat16)                    # [B, h*w, E]

    # TODO(synk): all_f stream, pos_embed + PostPosEmbed, 24 SAM transformer blocks
    #             + Adapter residuals, image_encoder.neck, FocalMambaBlock /
    #             MultimodalMamba / FusionMambaBlock, prompt_encoder, mask_decoder
    #             and the final bilinear upsample — external modules not provided.

    # 12-slice channel aggregation -> all_conv2 (BasicConv2d 3072->256, BN eval),
    # fused with conv2d(256,256,1)+SiLU+residual, all in one Pallas kernel.
    scale = params["all_conv2_gamma"] / jnp.sqrt(params["all_conv2_var"] + 1e-5)
    shift = params["all_conv2_beta"] - params["all_conv2_mean"] * scale
    w_folded = (params["all_conv2_w"].reshape(256, 12 * E) * scale[:, None]).T  # [12E,256]
    w_g = w_folded.reshape(12, E, 256)
    w2 = params["conv2d_w"].reshape(256, 256).T                                 # [256,256]
    out = grouped_conv1x1_residual(rgb_emb[:12], w_g, shift, w2,
                                   params["conv2d_b"])               # [h*w, 256] f32

    # single layout conversion at the model boundary: [h*w, 256] -> NCHW [1, 256, h, w]
    return out.reshape(1, h, w, 256).transpose(0, 3, 1, 2)


# ----------------------------------------------------------------------------
# Deterministic parameter construction + demo run.
# ----------------------------------------------------------------------------
def make_params(key, embed_dim=256):
    ks = jax.random.split(key, 8)
    p = {}
    p["patch_w"] = jax.random.normal(ks[0], (embed_dim, 3, 16, 16), jnp.float32) * 0.02
    p["patch_b"] = jax.random.normal(ks[1], (embed_dim,), jnp.float32) * 0.01
    cin2 = 12 * embed_dim   # = 3072 when embed_dim == 256, matching all_conv2
    p["all_conv2_w"] = jax.random.normal(ks[2], (256, cin2, 1, 1), jnp.float32) * 0.02
    p["all_conv2_gamma"] = jnp.ones((256,), jnp.float32)
    p["all_conv2_beta"] = jnp.zeros((256,), jnp.float32)
    p["all_conv2_mean"] = jax.random.normal(ks[3], (256,), jnp.float32) * 0.01
    p["all_conv2_var"] = jnp.ones((256,), jnp.float32)
    p["conv2d_w"] = jax.random.normal(ks[4], (256, 256, 1, 1), jnp.float32) * 0.02
    p["conv2d_b"] = jax.random.normal(ks[5], (256,), jnp.float32) * 0.01
    return p


if __name__ == "__main__":
    key = jax.random.PRNGKey(0)
    kf, ka, kp = jax.random.split(key, 3)
    # batch = 12 (ba = 1 branch), 3 channels, 32x32 spatial -> 2x2 patch grid
    focal = jax.random.normal(kf, (12, 3, 32, 32), jnp.float32)
    all_f = jax.random.normal(ka, (12, 3, 32, 32), jnp.float32)
    params = make_params(kp, embed_dim=256)

    out = model_forward(focal, all_f, params)
    out = jax.block_until_ready(out)
    assert out.shape == (1, 256, 2, 2)
    assert bool(jnp.all(jnp.isfinite(out)))
    print("KERNEL_OK")
</pallas_src>

<mosaic_0001>
module attributes {stable_mosaic.version = 11 : i64} {
  func.func @_matmul_bias_kernel(%arg0: i32, %arg1: memref<48x768xbf16, #tpu.memory_space<vmem>>, %arg2: memref<768x256xbf16, #tpu.memory_space<vmem>>, %arg3: memref<1x256xf32, #tpu.memory_space<vmem>>, %arg4: memref<48x256xbf16, #tpu.memory_space<vmem>>) attributes {dimension_semantics = [#tpu.dimension_semantics<parallel>], iteration_bounds = array<i64: 1>, scalar_prefetch = 0 : i64, scratch_operands = 0 : i64, tpu.core_type = #tpu.core_type<tc>, window_params = [{transform_indices = @transform_0, window_bounds = array<i64: 48, 768>}, {pipeline_mode = #tpu.pipeline_mode<synchronous>, transform_indices = @transform_1, window_bounds = array<i64: 768, 256>}, {pipeline_mode = #tpu.pipeline_mode<synchronous>, transform_indices = @transform_2, window_bounds = array<i64: 1, 256>}, {transform_indices = @transform_3, window_bounds = array<i64: 48, 256>}]} {
    %c0 = arith.constant 0 : index
    %c0_0 = arith.constant 0 : index
    %0 = vector.load %arg1[%c0, %c0_0] : memref<48x768xbf16, #tpu.memory_space<vmem>>, vector<48x768xbf16>
    %c0_1 = arith.constant 0 : index
    %c0_2 = arith.constant 0 : index
    %1 = vector.load %arg2[%c0_1, %c0_2] : memref<768x256xbf16, #tpu.memory_space<vmem>>, vector<768x256xbf16>
    %cst = arith.constant dense<0.000000e+00> : vector<48x256xf32>
    %2 = tpu.matmul %0, %1, %cst {dimension_numbers = #tpu.dot_dimension_numbers<[1], [0], [0], [1], [0, 0, 1, 1], [], []>} : vector<48x768xbf16>, vector<768x256xbf16>, vector<48x256xf32> -> vector<48x256xf32>
    %c0_3 = arith.constant 0 : index
    %c0_4 = arith.constant 0 : index
    %3 = vector.load %arg3[%c0_3, %c0_4] : memref<1x256xf32, #tpu.memory_space<vmem>>, vector<1x256xf32>
    %4 = vector.broadcast %3 : vector<1x256xf32> to vector<48x256xf32>
    %5 = arith.addf %2, %4 : vector<48x256xf32>
    %6 = arith.truncf %5 : vector<48x256xf32> to vector<48x256xbf16>
    %c0_5 = arith.constant 0 : index
    %c0_6 = arith.constant 0 : index
    %7 = vector.load %arg4[%c0_5, %c0_6] : memref<48x256xbf16, #tpu.memory_space<vmem>>, vector<48x256xbf16>
    tpu.vector_store %arg4[%c0_5, %c0_6], %6 {strides = array<i32>} : memref<48x256xbf16, #tpu.memory_space<vmem>>, vector<48x256xbf16>,
    return
  }
  func.func @transform_0(%arg0: i32) -> (i32, i32) {
    %c0_i32 = arith.constant 0 : i32
    %c0_i32_0 = arith.constant 0 : i32
    return %arg0, %c0_i32 : i32, i32
  }
  func.func @transform_1(%arg0: i32) -> (i32, i32) {
    %c0_i32 = arith.constant 0 : i32
    %c0_i32_0 = arith.constant 0 : i32
    %c0_i32_1 = arith.constant 0 : i32
    return %c0_i32, %c0_i32_0 : i32, i32
  }
  func.func @transform_2(%arg0: i32) -> (i32, i32) {
    %c0_i32 = arith.constant 0 : i32
    %c0_i32_0 = arith.constant 0 : i32
    %c0_i32_1 = arith.constant 0 : i32
    return %c0_i32, %c0_i32_0 : i32, i32
  }
  func.func @transform_3(%arg0: i32) -> (i32, i32) {
    %c0_i32 = arith.constant 0 : i32
    %c0_i32_0 = arith.constant 0 : i32
    return %arg0, %c0_i32 : i32, i32
  }
}

</mosaic_0001>

<llo_original>
// kernel: tpu_custom_call.1
$region0: #{tpu_custom_call.1}
  #allocation0 [shape = 'u32[]', space=smem, size = 0x4, offset = 0x4, fixed_abs, tag = 'smem constant byte address 0x4 - core index']
  #allocation1 [shape = 'u32[72,128]{1,0:T(1,128)}', space=vmem, size = 0x9000, scoped, tag = 'internal scratch']
  %s0 = inlined_call_operand.hbm [shape: bf16[48,768], index: 0, kind: input, shape index: {}]
  %s1 = inlined_call_operand.hbm [shape: bf16[768,256], index: 1, kind: input, shape index: {}]
  %s2 = inlined_call_operand.hbm [shape: f32[1,256], index: 2, kind: input, shape index: {}]
  %s3 = inlined_call_operand.hbm [shape: bf16[48,256], index: 3, kind: output, shape index: {}]
  %s4 = sld [smem:[#allocation0]]
  $region34: #{tpu_custom_call.1} parent=0
    _
  %s6 = ssub.s32 1, %s4
  %s7 = scalar_select 0, %s6, %s4
  $region1: #{tpu_custom_call.1} parent=0
    #allocation2 [shape = 'u8[73728]{0}', space=vmem, size = 0x12000, scoped, tag = 'input window, operand 0, single buffered']
    #allocation3 [shape = 's32[1]{0}', space=sflag, size = 0x4, scoped, tag = 'scoped memory for tpu_custom_call.1']
    #allocation4 [shape = 's32[1]{0}', space=sflag, size = 0x4, scoped, tag = 'scoped memory for tpu_custom_call.1']
    #allocation5 [shape = 'u8[393216]{0}', space=vmem, size = 0x60000, scoped, tag = 'input window, operand 1, single buffered']
    #allocation6 [shape = 's32[1]{0}', space=sflag, size = 0x4, scoped, tag = 'scoped memory for tpu_custom_call.1']
    #allocation7 [shape = 'u8[1024]{0}', space=vmem, size = 0x400, scoped, tag = 'input window, operand 2, single buffered']
    #allocation8 [shape = 'u8[24576]{0}', space=vmem, size = 0x6000, scoped, tag = 'output window, operand 0, single buffered']
    %8 = vsyncpa [#allocation3], 0
    %9 = vsyncpa [#allocation6], 0
    %10 = vsyncpa [#allocation4], 0
    // Predicated region
    $region2: #{tpu_custom_call.1} parent=1 // pred_check
      _
    $region3: #{tpu_custom_call.1} parent=1 // pred_check_branch
      %12 = sbr.rel (0) target = $region5
    $region4: #{tpu_custom_call.1} parent=1 // pred_region
      %14 = vsyncadd [#allocation3], 0
      %s15 = sshll.u32 %s0, 4
      %s16 = int_to_ptr.hbm [resolvable:$true] %s15
      %s17 = sshll.u32 [#allocation2], 4
      %s18 = int_to_ptr.vmem [resolvable:$true] %s17
      %23 = dma.hbm_to_vmem [thread:$0]  %s16, 2304, %s18, [#allocation3], 384, 384, 24
    $region5: #{tpu_custom_call.1} parent=1 // pred_fallthru
      _
    // Predicated region
    $region6: #{tpu_custom_call.1} parent=1 // pred_check
      _
    $region7: #{tpu_custom_call.1} parent=1 // pred_check_branch
      %25 = sbr.rel (0) target = $region9
    $region8: #{tpu_custom_call.1} parent=1 // pred_region
      %27 = vsyncadd [#allocation6], 0
      %s28 = sshll.u32 %s1, 4
      %s29 = int_to_ptr.hbm [resolvable:$true] %s28
      %s30 = sshll.u32 [#allocation5], 4
      %s31 = int_to_ptr.vmem [resolvable:$true] %s30
      %36 = dma.hbm_to_vmem [thread:$0]  %s29, 12288, %s31, [#allocation6], 128, 128, 8
    $region9: #{tpu_custom_call.1} parent=1 // pred_fallthru
      _
    // Predicated region
    $region10: #{tpu_custom_call.1} parent=1 // pred_check
      _
    $region11: #{tpu_custom_call.1} parent=1 // pred_check_branch
      %38 = sbr.rel (0) target = $region13
    $region12: #{tpu_custom_call.1} parent=1 // pred_region
      %40 = vsyncadd [#allocation6], 0
      %s42 = sshll.u32 %s2, 4
      %s43 = int_to_ptr.hbm [resolvable:$true] %s42
      %s44 = sshll.u32 [#allocation7], 4
      %s45 = int_to_ptr.vmem [resolvable:$true] %s44
      %47 = dma.hbm_to_vmem [thread:$0]  %s43, 32, %s45, [#allocation6]
    $region13: #{tpu_custom_call.1} parent=1 // pred_fallthru
      _
    // Predicated region
    $region14: #{tpu_custom_call.1} parent=1 // pred_check
      _
    $region15: #{tpu_custom_call.1} parent=1 // pred_check_branch
      %49 = sbr.rel (0) target = $region17
    $region16: #{tpu_custom_call.1} parent=1 // pred_region
      %51 = dma.done [#allocation3], 2304
    $region17: #{tpu_custom_call.1} parent=1 // pred_fallthru
      _
    // Predicated region
    $region18: #{tpu_custom_call.1} parent=1 // pred_check
      _
    $region19: #{tpu_custom_call.1} parent=1 // pred_check_branch
      %53 = sbr.rel (0) target = $region21
    $region20: #{tpu_custom_call.1} parent=1 // pred_region
      %55 = dma.done [#allocation6], 12288
    $region21: #{tpu_custom_call.1} parent=1 // pred_fallthru
      _
    // Predicated region
    $region22: #{tpu_custom_call.1} parent=1 // pred_check
      _
    $region23: #{tpu_custom_call.1} parent=1 // pred_check_branch
      %57 = sbr.rel (0) target = $region25
    $region24: #{tpu_custom_call.1} parent=1 // pred_region
      %59 = dma.done [#allocation6], 32
    $region25: #{tpu_custom_call.1} parent=1 // pred_fallthru
      _
    %v60 = vld [vmem:[#allocation2] sm:$0xff]
    %v61 = vld [vmem:[#allocation2 + $0x8] sm:$0xff]
    %v62 = vld [vmem:[#allocation2 + $0x10] sm:$0xff]
    %v63 = vld [vmem:[#allocation2 + $0x18] sm:$0xff]
    %v64 = vld [vmem:[#allocation2 + $0x20] sm:$0xff]
    %v65 = vld [vmem:[#allocation2 + $0x28] sm:$0xff]
    %v66 = vld [vmem:[#allocation2 + $0x30] sm:$0xff]
    %v67 = vld [vmem:[#allocation2 + $0x38] sm:$0xff]
    %v68 = vld [vmem:[#allocation2 + $0x40] sm:$0xff]
    %v69 = vld [vmem:[#allocation2 + $0x48] sm:$0xff]
    %v70 = vld [vmem:[#allocation2 + $0x50] sm:$0xff]
    %v71 = vld [vmem:[#allocation2 + $0x58] sm:$0xff]
    %v72 = vld [vmem:[#allocation2 + $0x60] sm:$0xff]
    %v73 = vld [vmem:[#allocation2 + $0x68] sm:$0xff]
    %v74 = vld [vmem:[#allocation2 + $0x70] sm:$0xff]
    %v75 = vld [vmem:[#allocation2 + $0x78] sm:$0xff]
    %v76 = vld [vmem:[#allocation2 + $0x80] sm:$0xff]
    %v77 = vld [vmem:[#allocation2 + $0x88] sm:$0xff]
    %v78 = vld [vmem:[#allocation5] sm:$0xff]
    %v79 = vld [vmem:[#allocation5 + $0x8] sm:$0xff]
    %v80 = vld [vmem:[#allocation5 + $0x10] sm:$0xff]
    %v81 = vld [vmem:[#allocation5 + $0x18] sm:$0xff]
    %v82 = vld [vmem:[#allocation5 + $0x20] sm:$0xff]
    %v83 = vld [vmem:[#allocation5 + $0x28] sm:$0xff]
    %v84 = vld [vmem:[#allocation5 + $0x30] sm:$0xff]
    %v85 = vld [vmem:[#allocation5 + $0x38] sm:$0xff]
    %v86 = vld [vmem:[#allocation5 + $0x40] sm:$0xff]
    %v87 = vld [vmem:[#allocation5 + $0x48] sm:$0xff]
    %v88 = vld [vmem:[#allocation5 + $0x50] sm:$0xff]
    %v89 = vld [vmem:[#allocation5 + $0x58] sm:$0xff]
    %v90 = vld [vmem:[#allocation5 + $0x60] sm:$0xff]
    %v91 = vld [vmem:[#allocation5 + $0x68] sm:$0xff]
    %v92 = vld [vmem:[#allocation5 + $0x70] sm:$0xff]
    %v93 = vld [vmem:[#allocation5 + $0x78] sm:$0xff]
    %v94 = vld [vmem:[#allocation5 + $0x80] sm:$0xff]
    %v95 = vld [vmem:[#allocation5 + $0x88] sm:$0xff]
    %v96 = vld [vmem:[#allocation5 + $0x90] sm:$0xff]
    %v97 = vld [vmem:[#allocation5 + $0x98] sm:$0xff]
    %v98 = vld [vmem:[#allocation5 + $0xa0] sm:$0xff]
    %v99 = vld [vmem:[#allocation5 + $0xa8] sm:$0xff]
    %v100 = vld [vmem:[#allocation5 + $0xb0] sm:$0xff]
    %v101 = vld [vmem:[#allocation5 + $0xb8] sm:$0xff]
    %v102 = vld [vmem:[#allocation5 + $0xc0] sm:$0xff]
    %v103 = vld [vmem:[#allocation5 + $0xc8] sm:$0xff]
    %v104 = vld [vmem:[#allocation5 + $0xd0] sm:$0xff]
    %v105 = vld [vmem:[#allocation5 + $0xd8] sm:$0xff]
    %v106 = vld [vmem:[#allocation5 + $0xe0] sm:$0xff]
    %v107 = vld [vmem:[#allocation5 + $0xe8] sm:$0xff]
    %v108 = vld [vmem:[#allocation5 + $0xf0] sm:$0xff]
    %v109 = vld [vmem:[#allocation5 + $0xf8] sm:$0xff]
    %v110 = vld [vmem:[#allocation5 + $0x100] sm:$0xff]
    %v111 = vld [vmem:[#allocation5 + $0x108] sm:$0xff]
    %v112 = vld [vmem:[#allocation5 + $0x110] sm:$0xff]
    %v113 = vld [vmem:[#allocation5 + $0x118] sm:$0xff]
    %v114 = vld [vmem:[#allocation5 + $0x120] sm:$0xff]
    %v115 = vld [vmem:[#allocation5 + $0x128] sm:$0xff]
    %v116 = vld [vmem:[#allocation5 + $0x130] sm:$0xff]
    %v117 = vld [vmem:[#allocation5 + $0x138] sm:$0xff]
    %v118 = vld [vmem:[#allocation5 + $0x140] sm:$0xff]
    %v119 = vld [vmem:[#allocation5 + $0x148] sm:$0xff]
    %v120 = vld [vmem:[#allocation5 + $0x150] sm:$0xff]
    %v121 = vld [vmem:[#allocation5 + $0x158] sm:$0xff]
    %v122 = vld [vmem:[#allocation5 + $0x160] sm:$0xff]
    %v123 = vld [vmem:[#allocation5 + $0x168] sm:$0xff]
    %v124 = vld [vmem:[#allocation5 + $0x170] sm:$0xff]
    %v125 = vld [vmem:[#allocation5 + $0x178] sm:$0xff]
    %v126 = vld [vmem:[#allocation5 + $0x180] sm:$0xff]
    %v127 = vld [vmem:[#allocation5 + $0x188] sm:$0xff]
    %v128 = vld [vmem:[#allocation5 + $0x190] sm:$0xff]
    %v129 = vld [vmem:[#allocation5 + $0x198] sm:$0xff]
    %v130 = vld [vmem:[#allocation5 + $0x1a0] sm:$0xff]
    %v131 = vld [vmem:[#allocation5 + $0x1a8] sm:$0xff]
    %v132 = vld [vmem:[#allocation5 + $0x1b0] sm:$0xff]
    %v133 = vld [vmem:[#allocation5 + $0x1b8] sm:$0xff]
    %v134 = vld [vmem:[#allocation5 + $0x1c0] sm:$0xff]
    %v135 = vld [vmem:[#allocation5 + $0x1c8] sm:$0xff]
    %v136 = vld [vmem:[#allocation5 + $0x1d0] sm:$0xff]
    %v137 = vld [vmem:[#allocation5 + $0x1d8] sm:$0xff]
    %v138 = vld [vmem:[#allocation5 + $0x1e0] sm:$0xff]
    %v139 = vld [vmem:[#allocation5 + $0x1e8] sm:$0xff]
    %v140 = vld [vmem:[#allocation5 + $0x1f0] sm:$0xff]
    %v141 = vld [vmem:[#allocation5 + $0x1f8] sm:$0xff]
    %v142 = vld [vmem:[#allocation5 + $0x200] sm:$0xff]
    %v143 = vld [vmem:[#allocation5 + $0x208] sm:$0xff]
    %v144 = vld [vmem:[#allocation5 + $0x210] sm:$0xff]
    %v145 = vld [vmem:[#allocation5 + $0x218] sm:$0xff]
    %v146 = vld [vmem:[#allocation5 + $0x220] sm:$0xff]
    %v147 = vld [vmem:[#allocation5 + $0x228] sm:$0xff]
    %v148 = vld [vmem:[#allocation5 + $0x230] sm:$0xff]
    %v149 = vld [vmem:[#allocation5 + $0x238] sm:$0xff]
    %v150 = vld [vmem:[#allocation5 + $0x240] sm:$0xff]
    %v151 = vld [vmem:[#allocation5 + $0x248] sm:$0xff]
    %v152 = vld [vmem:[#allocation5 + $0x250] sm:$0xff]
    %v153 = vld [vmem:[#allocation5 + $0x258] sm:$0xff]
    %v154 = vld [vmem:[#allocation5 + $0x260] sm:$0xff]
    %v155 = vld [vmem:[#allocation5 + $0x268] sm:$0xff]
    %v156 = vld [vmem:[#allocation5 + $0x270] sm:$0xff]
    %v157 = vld [vmem:[#allocation5 + $0x278] sm:$0xff]
    %v158 = vld [vmem:[#allocation5 + $0x280] sm:$0xff]
    %v159 = vld [vmem:[#allocation5 + $0x288] sm:$0xff]
    %v160 = vld [vmem:[#allocation5 + $0x290] sm:$0xff]
    %v161 = vld [vmem:[#allocation5 + $0x298] sm:$0xff]
    %v162 = vld [vmem:[#allocation5 + $0x2a0] sm:$0xff]
    %v163 = vld [vmem:[#allocation5 + $0x2a8] sm:$0xff]
    %v164 = vld [vmem:[#allocation5 + $0x2b0] sm:$0xff]
    %v165 = vld [vmem:[#allocation5 + $0x2b8] sm:$0xff]
    %v166 = vld [vmem:[#allocation5 + $0x2c0] sm:$0xff]
    %v167 = vld [vmem:[#allocation5 + $0x2c8] sm:$0xff]
    %v168 = vld [vmem:[#allocation5 + $0x2d0] sm:$0xff]
    %v169 = vld [vmem:[#allocation5 + $0x2d8] sm:$0xff]
    %v170 = vld [vmem:[#allocation5 + $0x2e0] sm:$0xff]
    %v171 = vld [vmem:[#allocation5 + $0x2e8] sm:$0xff]
    %v172 = vld [vmem:[#allocation5 + $0x2f0] sm:$0xff]
    %v173 = vld [vmem:[#allocation5 + $0x2f8] sm:$0xff]
    %v174 = vld [vmem:[#allocation7] sm:$0x3]
    %v176 = vperm.slane %v174, 0
    %v177 = vperm.slane %v174, 1
    %v198 = vunpack.c.l.b16 %v60
    %v199 = vunpack.c.h.b16 %v60
    %v200 = vunpack.c.l.b16 %v61
    %v201 = vunpack.c.h.b16 %v61
    %v202 = vunpack.c.l.b16 %v62
    %v203 = vunpack.c.h.b16 %v62
    %v204 = vunpack.c.l.b16 %v63
    %v205 = vunpack.c.h.b16 %v63
    %v206 = vunpack.c.l.b16 %v64
    %v207 = vunpack.c.h.b16 %v64
    %v208 = vunpack.c.l.b16 %v65
    %v209 = vunpack.c.h.b16 %v65
    %v210 = vunpack.c.l.b16 %v66
    %v211 = vunpack.c.h.b16 %v66
    %v212 = vunpack.c.l.b16 %v67
    %v213 = vunpack.c.h.b16 %v67
    %v214 = vunpack.c.l.b16 %v68
    %v215 = vunpack.c.h.b16 %v68
    %v216 = vunpack.c.l.b16 %v69
    %v217 = vunpack.c.h.b16 %v69
    %v218 = vunpack.c.l.b16 %v70
    %v219 = vunpack.c.h.b16 %v70
    %v220 = vunpack.c.l.b16 %v71
    %v221 = vunpack.c.h.b16 %v71
    %v222 = vunpack.c.l.b16 %v72
    %v223 = vunpack.c.h.b16 %v72
    %v224 = vunpack.c.l.b16 %v73
    %v225 = vunpack.c.h.b16 %v73
    %v226 = vunpack.c.l.b16 %v74
    %v227 = vunpack.c.h.b16 %v74
    %v228 = vunpack.c.l.b16 %v75
    %v229 = vunpack.c.h.b16 %v75
    %v230 = vunpack.c.l.b16 %v76
    %v231 = vunpack.c.h.b16 %v76
    %v232 = vunpack.c.l.b16 %v77
    %v233 = vunpack.c.h.b16 %v77
    %v234 = vpack.c.b16 %v204, %v198
    %v235 = vpack.c.b16 %v205, %v199
    %v236 = vpack.c.b16 %v206, %v200
    %v237 = vpack.c.b16 %v207, %v201
    %v238 = vpack.c.b16 %v208, %v202
    %v239 = vpack.c.b16 %v209, %v203
    %v240 = vpack.c.b16 %v216, %v210
    %v241 = vpack.c.b16 %v217, %v211
    %v242 = vpack.c.b16 %v218, %v212
    %v243 = vpack.c.b16 %v219, %v213
    %v244 = vpack.c.b16 %v220, %v214
    %v245 = vpack.c.b16 %v221, %v215
    %v246 = vpack.c.b16 %v228, %v222
    %v247 = vpack.c.b16 %v229, %v223
    %v248 = vpack.c.b16 %v230, %v224
    %v249 = vpack.c.b16 %v231, %v225
    %v250 = vpack.c.b16 %v232, %v226
    %v251 = vpack.c.b16 %v233, %v227
    %v366 = vunpack.c.l.b16 %v78
    %v367 = vunpack.c.h.b16 %v78
    %v368 = vunpack.c.l.b16 %v79
    %v369 = vunpack.c.h.b16 %v79
    %v370 = vunpack.c.l.b16 %v80
    %v371 = vunpack.c.h.b16 %v80
    %v372 = vunpack.c.l.b16 %v81
    %v373 = vunpack.c.h.b16 %v81
    %v374 = vunpack.c.l.b16 %v82
    %v375 = vunpack.c.h.b16 %v82
    %v376 = vunpack.c.l.b16 %v83
    %v377 = vunpack.c.h.b16 %v83
    %v378 = vunpack.c.l.b16 %v84
    %v379 = vunpack.c.h.b16 %v84
    %v380 = vunpack.c.l.b16 %v85
    %v381 = vunpack.c.h.b16 %v85
    %v382 = vunpack.c.l.b16 %v86
    %v383 = vunpack.c.h.b16 %v86
    %v384 = vunpack.c.l.b16 %v87
    %v385 = vunpack.c.h.b16 %v87
    %v386 = vunpack.c.l.b16 %v88
    %v387 = vunpack.c.h.b16 %v88
    %v388 = vunpack.c.l.b16 %v89
    %v389 = vunpack.c.h.b16 %v89
    %v390 = vunpack.c.l.b16 %v90
    %v391 = vunpack.c.h.b16 %v90
    %v392 = vunpack.c.l.b16 %v91
    %v393 = vunpack.c.h.b16 %v91
    %v394 = vunpack.c.l.b16 %v92
    %v395 = vunpack.c.h.b16 %v92
    %v396 = vunpack.c.l.b16 %v93
    %v397 = vunpack.c.h.b16 %v93
    %v398 = vunpack.c.l.b16 %v94
    %v399 = vunpack.c.h.b16 %v94
    %v400 = vunpack.c.l.b16 %v95
    %v401 = vunpack.c.h.b16 %v95
    %v402 = vunpack.c.l.b16 %v96
    %v403 = vunpack.c.h.b16 %v96
    %v404 = vunpack.c.l.b16 %v97
    %v405 = vunpack.c.h.b16 %v97
    %v406 = vunpack.c.l.b16 %v98
    %v407 = vunpack.c.h.b16 %v98
    %v408 = vunpack.c.l.b16 %v99
    %v409 = vunpack.c.h.b16 %v99
    %v410 = vunpack.c.l.b16 %v100
    %v411 = vunpack.c.h.b16 %v100
    %v412 = vunpack.c.l.b16 %v101
    %v413 = vunpack.c.h.b16 %v101
    %v414 = vunpack.c.l.b16 %v102
    %v415 = vunpack.c.h.b16 %v102
    %v416 = vunpack.c.l.b16 %v103
    %v417 = vunpack.c.h.b16 %v103
    %v418 = vunpack.c.l.b16 %v104
    %v419 = vunpack.c.h.b16 %v104
    %v420 = vunpack.c.l.b16 %v105
    %v421 = vunpack.c.h.b16 %v105
    %v422 = vunpack.c.l.b16 %v106
    %v423 = vunpack.c.h.b16 %v106
    %v424 = vunpack.c.l.b16 %v107
    %v425 = vunpack.c.h.b16 %v107
    %v426 = vunpack.c.l.b16 %v108
    %v427 = vunpack.c.h.b16 %v108
    %v428 = vunpack.c.l.b16 %v109
    %v429 = vunpack.c.h.b16 %v109
    %v430 = vunpack.c.l.b16 %v110
    %v431 = vunpack.c.h.b16 %v110
    %v432 = vunpack.c.l.b16 %v111
    %v433 = vunpack.c.h.b16 %v111
    %v434 = vunpack.c.l.b16 %v112
    %v435 = vunpack.c.h.b16 %v112
    %v436 = vunpack.c.l.b16 %v113
    %v437 = vunpack.c.h.b16 %v113
    %v438 = vunpack.c.l.b16 %v114
    %v439 = vunpack.c.h.b16 %v114
    %v440 = vunpack.c.l.b16 %v115
    %v441 = vunpack.c.h.b16 %v115
    %v442 = vunpack.c.l.b16 %v116
    %v443 = vunpack.c.h.b16 %v116
    %v444 = vunpack.c.l.b16 %v117
    %v445 = vunpack.c.h.b16 %v117
    %v446 = vunpack.c.l.b16 %v118
    %v447 = vunpack.c.h.b16 %v118
    %v448 = vunpack.c.l.b16 %v119
    %v449 = vunpack.c.h.b16 %v119
    %v450 = vunpack.c.l.b16 %v120
    %v451 = vunpack.c.h.b16 %v120
    %v452 = vunpack.c.l.b16 %v121
    %v453 = vunpack.c.h.b16 %v121
    %v454 = vunpack.c.l.b16 %v122
    %v455 = vunpack.c.h.b16 %v122
    %v456 = vunpack.c.l.b16 %v123
    %v457 = vunpack.c.h.b16 %v123
    %v458 = vunpack.c.l.b16 %v124
    %v459 = vunpack.c.h.b16 %v124
    %v460 = vunpack.c.l.b16 %v125
    %v461 = vunpack.c.h.b16 %v125
    %v462 = vunpack.c.l.b16 %v126
    %v463 = vunpack.c.h.b16 %v126
    %v464 = vunpack.c.l.b16 %v127
    %v465 = vunpack.c.h.b16 %v127
    %v466 = vunpack.c.l.b16 %v128
    %v467 = vunpack.c.h.b16 %v128
    %v468 = vunpack.c.l.b16 %v129
    %v469 = vunpack.c.h.b16 %v129
    %v470 = vunpack.c.l.b16 %v130
    %v471 = vunpack.c.h.b16 %v130
    %v472 = vunpack.c.l.b16 %v131
    %v473 = vunpack.c.h.b16 %v131
    %v474 = vunpack.c.l.b16 %v132
    %v475 = vunpack.c.h.b16 %v132
    %v476 = vunpack.c.l.b16 %v133
    %v477 = vunpack.c.h.b16 %v133
    %v478 = vunpack.c.l.b16 %v134
    %v479 = vunpack.c.h.b16 %v134
    %v480 = vunpack.c.l.b16 %v135
    %v481 = vunpack.c.h.b16 %v135
    %v482 = vunpack.c.l.b16 %v136
    %v483 = vunpack.c.h.b16 %v136
    %v484 = vunpack.c.l.b16 %v137
    %v485 = vunpack.c.h.b16 %v137
    %v486 = vunpack.c.l.b16 %v138
    %v487 = vunpack.c.h.b16 %v138
    %v488 = vunpack.c.l.b16 %v139
    %v489 = vunpack.c.h.b16 %v139
    %v490 = vunpack.c.l.b16 %v140
    %v491 = vunpack.c.h.b16 %v140
    %v492 = vunpack.c.l.b16 %v141
    %v493 = vunpack.c.h.b16 %v141
    %v494 = vunpack.c.l.b16 %v142
    %v495 = vunpack.c.h.b16 %v142
    %v496 = vunpack.c.l.b16 %v143
    %v497 = vunpack.c.h.b16 %v143
    %v498 = vunpack.c.l.b16 %v144
    %v499 = vunpack.c.h.b16 %v144
    %v500 = vunpack.c.l.b16 %v145
    %v501 = vunpack.c.h.b16 %v145
    %v502 = vunpack.c.l.b16 %v146
    %v503 = vunpack.c.h.b16 %v146
    %v504 = vunpack.c.l.b16 %v147
    %v505 = vunpack.c.h.b16 %v147
    %v506 = vunpack.c.l.b16 %v148
    %v507 = vunpack.c.h.b16 %v148
    %v508 = vunpack.c.l.b16 %v149
    %v509 = vunpack.c.h.b16 %v149
    %v510 = vunpack.c.l.b16 %v150
    %v511 = vunpack.c.h.b16 %v150
    %v512 = vunpack.c.l.b16 %v151
    %v513 = vunpack.c.h.b16 %v151
    %v514 = vunpack.c.l.b16 %v152
    %v515 = vunpack.c.h.b16 %v152
    %v516 = vunpack.c.l.b16 %v153
    %v517 = vunpack.c.h.b16 %v153
    %v518 = vunpack.c.l.b16 %v154
    %v519 = vunpack.c.h.b16 %v154
    %v520 = vunpack.c.l.b16 %v155
    %v521 = vunpack.c.h.b16 %v155
    %v522 = vunpack.c.l.b16 %v156
    %v523 = vunpack.c.h.b16 %v156
    %v524 = vunpack.c.l.b16 %v157
    %v525 = vunpack.c.h.b16 %v157
    %v526 = vunpack.c.l.b16 %v158
    %v527 = vunpack.c.h.b16 %v158
    %v528 = vunpack.c.l.b16 %v159
    %v529 = vunpack.c.h.b16 %v159
    %v530 = vunpack.c.l.b16 %v160
    %v531 = vunpack.c.h.b16 %v160
    %v532 = vunpack.c.l.b16 %v161
    %v533 = vunpack.c.h.b16 %v161
    %v534 = vunpack.c.l.b16 %v162
    %v535 = vunpack.c.h.b16 %v162
    %v536 = vunpack.c.l.b16 %v163
    %v537 = vunpack.c.h.b16 %v163
    %v538 = vunpack.c.l.b16 %v164
    %v539 = vunpack.c.h.b16 %v164
    %v540 = vunpack.c.l.b16 %v165
    %v541 = vunpack.c.h.b16 %v165
    %v542 = vunpack.c.l.b16 %v166
    %v543 = vunpack.c.h.b16 %v166
    %v544 = vunpack.c.l.b16 %v167
    %v545 = vunpack.c.h.b16 %v167
    %v546 = vunpack.c.l.b16 %v168
    %v547 = vunpack.c.h.b16 %v168
    %v548 = vunpack.c.l.b16 %v169
    %v549 = vunpack.c.h.b16 %v169
    %v550 = vunpack.c.l.b16 %v170
    %v551 = vunpack.c.h.b16 %v170
    %v552 = vunpack.c.l.b16 %v171
    %v553 = vunpack.c.h.b16 %v171
    %v554 = vunpack.c.l.b16 %v172
    %v555 = vunpack.c.h.b16 %v172
    %v556 = vunpack.c.l.b16 %v173
    %v557 = vunpack.c.h.b16 %v173
    %v558 = vpack.c.b16 %v368, %v366
    %v559 = vpack.c.b16 %v369, %v367
    %v560 = vpack.c.b16 %v372, %v370
    %v561 = vpack.c.b16 %v373, %v371
    %v562 = vpack.c.b16 %v376, %v374
    %v563 = vpack.c.b16 %v377, %v375
    %v564 = vpack.c.b16 %v380, %v378
    %v565 = vpack.c.b16 %v381, %v379
    %v566 = vpack.c.b16 %v384, %v382
    %v567 = vpack.c.b16 %v385, %v383
    %v568 = vpack.c.b16 %v388, %v386
    %v569 = vpack.c.b16 %v389, %v387
    %v570 = vpack.c.b16 %v392, %v390
    %v571 = vpack.c.b16 %v393, %v391
    %v572 = vpack.c.b16 %v396, %v394
    %v573 = vpack.c.b16 %v397, %v395
    %v574 = vpack.c.b16 %v400, %v398
    %v575 = vpack.c.b16 %v401, %v399
    %v576 = vpack.c.b16 %v404, %v402
    %v577 = vpack.c.b16 %v405, %v403
    %v578 = vpack.c.b16 %v408, %v406
    %v579 = vpack.c.b16 %v409, %v407
    %v580 = vpack.c.b16 %v412, %v410
    %v581 = vpack.c.b16 %v413, %v411
    %v582 = vpack.c.b16 %v416, %v414
    %v583 = vpack.c.b16 %v417, %v415
    %v584 = vpack.c.b16 %v420, %v418
    %v585 = vpack.c.b16 %v421, %v419
    %v586 = vpack.c.b16 %v424, %v422
    %v587 = vpack.c.b16 %v425, %v423
    %v588 = vpack.c.b16 %v428, %v426
    %v589 = vpack.c.b16 %v429, %v427
    %v590 = vpack.c.b16 %v432, %v430
    %v591 = vpack.c.b16 %v433, %v431
    %v592 = vpack.c.b16 %v436, %v434
    %v593 = vpack.c.b16 %v437, %v435
    %v594 = vpack.c.b16 %v440, %v438
    %v595 = vpack.c.b16 %v441, %v439
    %v596 = vpack.c.b16 %v444, %v442
    %v597 = vpack.c.b16 %v445, %v443
    %v598 = vpack.c.b16 %v448, %v446
    %v599 = vpack.c.b16 %v449, %v447
    %v600 = vpack.c.b16 %v452, %v450
    %v601 = vpack.c.b16 %v453, %v451
    %v602 = vpack.c.b16 %v456, %v454
    %v603 = vpack.c.b16 %v457, %v455
    %v604 = vpack.c.b16 %v460, %v458
    %v605 = vpack.c.b16 %v461, %v459
    %v606 = vpack.c.b16 %v464, %v462
    %v607 = vpack.c.b16 %v465, %v463
    %v608 = vpack.c.b16 %v468, %v466
    %v609 = vpack.c.b16 %v469, %v467
    %v610 = vpack.c.b16 %v472, %v470
    %v611 = vpack.c.b16 %v473, %v471
    %v612 = vpack.c.b16 %v476, %v474
    %v613 = vpack.c.b16 %v477, %v475
    %v614 = vpack.c.b16 %v480, %v478
    %v615 = vpack.c.b16 %v481, %v479
    %v616 = vpack.c.b16 %v484, %v482
    %v617 = vpack.c.b16 %v485, %v483
    %v618 = vpack.c.b16 %v488, %v486
    %v619 = vpack.c.b16 %v489, %v487
    %v620 = vpack.c.b16 %v492, %v490
    %v621 = vpack.c.b16 %v493, %v491
    %v622 = vpack.c.b16 %v496, %v494
    %v623 = vpack.c.b16 %v497, %v495
    %v624 = vpack.c.b16 %v500, %v498
    %v625 = vpack.c.b16 %v501, %v499
    %v626 = vpack.c.b16 %v504, %v502
    %v627 = vpack.c.b16 %v505, %v503
    %v628 = vpack.c.b16 %v508, %v506
    %v629 = vpack.c.b16 %v509, %v507
    %v630 = vpack.c.b16 %v512, %v510
    %v631 = vpack.c.b16 %v513, %v511
    %v632 = vpack.c.b16 %v516, %v514
    %v633 = vpack.c.b16 %v517, %v515
    %v634 = vpack.c.b16 %v520, %v518
    %v635 = vpack.c.b16 %v521, %v519
    %v636 = vpack.c.b16 %v524, %v522
    %v637 = vpack.c.b16 %v525, %v523
    %v638 = vpack.c.b16 %v528, %v526
    %v639 = vpack.c.b16 %v529, %v527
    %v640 = vpack.c.b16 %v532, %v530
    %v641 = vpack.c.b16 %v533, %v531
    %v642 = vpack.c.b16 %v536, %v534
    %v643 = vpack.c.b16 %v537, %v535
    %v644 = vpack.c.b16 %v540, %v538
    %v645 = vpack.c.b16 %v541, %v539
    %v646 = vpack.c.b16 %v544, %v542
    %v647 = vpack.c.b16 %v545, %v543
    %v648 = vpack.c.b16 %v548, %v546
    %v649 = vpack.c.b16 %v549, %v547
    %v650 = vpack.c.b16 %v552, %v550
    %v651 = vpack.c.b16 %v553, %v551
    %v652 = vpack.c.b16 %v556, %v554
    %v653 = vpack.c.b16 %v557, %v555
    %750 = vmatpush.bf16.msra.mxu0 %v572
    %751 = vmatpush.bf16.msra.mxu0 %v570
    %752 = vmatpush.bf16.msra.mxu0 %v568
    %753 = vmatpush.bf16.msra.mxu0 %v566
    %754 = vmatpush.bf16.msra.mxu0 %v564
    %755 = vmatpush.bf16.msra.mxu0 %v562
    %756 = vmatpush.bf16.msra.mxu0 %v560
    %757 = vmatpush.bf16.msra.mxu0 %v558
    %758 = vmatmul.bf16.gmra.mxu0 %v234
    %v759 = vpop.f32.mrf.mxu0
    %v760 = vadd.f32 %v176, %v759
    %v761 = vpop.f32.mrf.mxu0
    %v762 = vadd.f32 %v176, %v761
    %763 = vmatmul.bf16.gmra.mxu0 %v240
    %v764 = vpop.f32.mrf.mxu0
    %v765 = vadd.f32 %v176, %v764
    %v766 = vpop.f32.mrf.mxu0
    %v767 = vadd.f32 %v176, %v766
    %768 = vmatmul.bf16.gmra.mxu0 %v246
    %v769 = vpop.f32.mrf.mxu0
    %v770 = vadd.f32 %v176, %v769
    %v771 = vpop.f32.mrf.mxu0
    %v772 = vadd.f32 %v176, %v771
    %773 = vdwg.mxu0
    %774 = vmatpush.bf16.msra.mxu0 %v588
    %775 = vmatpush.bf16.msra.mxu0 %v586
    %776 = vmatpush.bf16.msra.mxu0 %v584
    %777 = vmatpush.bf16.msra.mxu0 %v582
    %778 = vmatpush.bf16.msra.mxu0 %v580
    %779 = vmatpush.bf16.msra.mxu0 %v578
    %780 = vmatpush.bf16.msra.mxu0 %v576
    %781 = vmatpush.bf16.msra.mxu0 %v574
    %782 = vmatmul.bf16.gmra.mxu0 %v235
    %v783 = vpop.f32.mrf.mxu0
    %v784 = vadd.f32 %v760, %v783
    %v785 = vpop.f32.mrf.mxu0
    %v786 = vadd.f32 %v762, %v785
    %787 = vmatmul.bf16.gmra.mxu0 %v241
    %v788 = vpop.f32.mrf.mxu0
    %v789 = vadd.f32 %v765, %v788
    %v790 = vpop.f32.mrf.mxu0
    %v791 = vadd.f32 %v767, %v790
    %792 = vmatmul.bf16.gmra.mxu0 %v247
    %v793 = vpop.f32.mrf.mxu0
    %v794 = vadd.f32 %v770, %v793
    %v795 = vpop.f32.mrf.mxu0
    %v796 = vadd.f32 %v772, %v795
    %797 = vdwg.mxu0
    %798 = vmatpush.bf16.msra.mxu0 %v604
    %799 = vmatpush.bf16.msra.mxu0 %v602
    %800 = vmatpush.bf16.msra.mxu0 %v600
    %801 = vmatpush.bf16.msra.mxu0 %v598
    %802 = vmatpush.bf16.msra.mxu0 %v596
    %803 = vmatpush.bf16.msra.mxu0 %v594
    %804 = vmatpush.bf16.msra.mxu0 %v592
    %805 = vmatpush.bf16.msra.mxu0 %v590
    %806 = vmatmul.bf16.gmra.mxu0 %v236
    %v807 = vpop.f32.mrf.mxu0
    %v808 = vadd.f32 %v784, %v807
    %v809 = vpop.f32.mrf.mxu0
    %v810 = vadd.f32 %v786, %v809
    %811 = vmatmul.bf16.gmra.mxu0 %v242
    %v812 = vpop.f32.mrf.mxu0
    %v813 = vadd.f32 %v789, %v812
    %v814 = vpop.f32.mrf.mxu0
    %v815 = vadd.f32 %v791, %v814
    %816 = vmatmul.bf16.gmra.mxu0 %v248
    %v817 = vpop.f32.mrf.mxu0
    %v818 = vadd.f32 %v794, %v817
    %v819 = vpop.f32.mrf.mxu0
    %v820 = vadd.f32 %v796, %v819
    %821 = vdwg.mxu0
    %822 = vmatpush.bf16.msra.mxu0 %v620
    %823 = vmatpush.bf16.msra.mxu0 %v618
    %824 = vmatpush.bf16.msra.mxu0 %v616
    %825 = vmatpush.bf16.msra.mxu0 %v614
    %826 = vmatpush.bf16.msra.mxu0 %v612
    %827 = vmatpush.bf16.msra.mxu0 %v610
    %828 = vmatpush.bf16.msra.mxu0 %v608
    %829 = vmatpush.bf16.msra.mxu0 %v606
    %830 = vmatmul.bf16.gmra.mxu0 %v237
    %v831 = vpop.f32.mrf.mxu0
    %v832 = vadd.f32 %v808, %v831
    %v833 = vpop.f32.mrf.mxu0
    %v834 = vadd.f32 %v810, %v833
    %835 = vmatmul.bf16.gmra.mxu0 %v243
    %v836 = vpop.f32.mrf.mxu0
    %v837 = vadd.f32 %v813, %v836
    %v838 = vpop.f32.mrf.mxu0
    %v839 = vadd.f32 %v815, %v838
    %840 = vmatmul.bf16.gmra.mxu0 %v249
    %v841 = vpop.f32.mrf.mxu0
    %v842 = vadd.f32 %v818, %v841
    %v843 = vpop.f32.mrf.mxu0
    %v844 = vadd.f32 %v820, %v843
    %845 = vdwg.mxu0
    %846 = vmatpush.bf16.msra.mxu0 %v636
    %847 = vmatpush.bf16.msra.mxu0 %v634
    %848 = vmatpush.bf16.msra.mxu0 %v632
    %849 = vmatpush.bf16.msra.mxu0 %v630
    %850 = vmatpush.bf16.msra.mxu0 %v628
    %851 = vmatpush.bf16.msra.mxu0 %v626
    %852 = vmatpush.bf16.msra.mxu0 %v624
    %853 = vmatpush.bf16.msra.mxu0 %v622
    %854 = vmatmul.bf16.gmra.mxu0 %v238
    %v855 = vpop.f32.mrf.mxu0
    %v856 = vadd.f32 %v832, %v855
    %v857 = vpop.f32.mrf.mxu0
    %v858 = vadd.f32 %v834, %v857
    %859 = vmatmul.bf16.gmra.mxu0 %v244
    %v860 = vpop.f32.mrf.mxu0
    %v861 = vadd.f32 %v837, %v860
    %v862 = vpop.f32.mrf.mxu0
    %v863 = vadd.f32 %v839, %v862
    %864 = vmatmul.bf16.gmra.mxu0 %v250
    %v865 = vpop.f32.mrf.mxu0
    %v866 = vadd.f32 %v842, %v865
    %v867 = vpop.f32.mrf.mxu0
    %v868 = vadd.f32 %v844, %v867
    %869 = vdwg.mxu0
    %870 = vmatpush.bf16.msra.mxu0 %v652
    %871 = vmatpush.bf16.msra.mxu0 %v650
    %872 = vmatpush.bf16.msra.mxu0 %v648
    %873 = vmatpush.bf16.msra.mxu0 %v646
    %874 = vmatpush.bf16.msra.mxu0 %v644
    %875 = vmatpush.bf16.msra.mxu0 %v642
    %876 = vmatpush.bf16.msra.mxu0 %v640
    %877 = vmatpush.bf16.msra.mxu0 %v638
    %878 = vmatmul.bf16.gmra.mxu0 %v239
    %v879 = vpop.f32.mrf.mxu0
    %v880 = vadd.f32 %v856, %v879
    %v881 = vpop.f32.mrf.mxu0
    %v882 = vadd.f32 %v858, %v881
    %883 = vmatmul.bf16.gmra.mxu0 %v245
    %v884 = vpop.f32.mrf.mxu0
    %v885 = vadd.f32 %v861, %v884
    %v886 = vpop.f32.mrf.mxu0
    %v887 = vadd.f32 %v863, %v886
    %888 = vmatmul.bf16.gmra.mxu0 %v251
    %v889 = vpop.f32.mrf.mxu0
    %v890 = vadd.f32 %v866, %v889
    %v891 = vpop.f32.mrf.mxu0
    %v892 = vadd.f32 %v868, %v891
    %893 = vdwg.mxu0
    %894 = vmatpush.bf16.msra.mxu0 %v573
    %895 = vmatpush.bf16.msra.mxu0 %v571
    %896 = vmatpush.bf16.msra.mxu0 %v569
    %897 = vmatpush.bf16.msra.mxu0 %v567
    %898 = vmatpush.bf16.msra.mxu0 %v565
    %899 = vmatpush.bf16.msra.mxu0 %v563
    %900 = vmatpush.bf16.msra.mxu0 %v561
    %901 = vmatpush.bf16.msra.mxu0 %v559
    %902 = vmatmul.bf16.gmra.mxu0 %v234
    %v903 = vpop.f32.mrf.mxu0
    %v904 = vadd.f32 %v177, %v903
    %v905 = vpop.f32.mrf.mxu0
    %v906 = vadd.f32 %v177, %v905
    %907 = vmatmul.bf16.gmra.mxu0 %v240
    %v908 = vpop.f32.mrf.mxu0
    %v909 = vadd.f32 %v177, %v908
    %v910 = vpop.f32.mrf.mxu0
    %v911 = vadd.f32 %v177, %v910
    %912 = vmatmul.bf16.gmra.mxu0 %v246
    %v913 = vpop.f32.mrf.mxu0
    %v914 = vadd.f32 %v177, %v913
    %v915 = vpop.f32.mrf.mxu0
    %v916 = vadd.f32 %v177, %v915
    %917 = vdwg.mxu0
    %918 = vmatpush.bf16.msra.mxu0 %v589
    %919 = vmatpush.bf16.msra.mxu0 %v587
    %920 = vmatpush.bf16.msra.mxu0 %v585
    %921 = vmatpush.bf16.msra.mxu0 %v583
    %922 = vmatpush.bf16.msra.mxu0 %v581
    %923 = vmatpush.bf16.msra.mxu0 %v579
    %924 = vmatpush.bf16.msra.mxu0 %v577
    %925 = vmatpush.bf16.msra.mxu0 %v575
    %926 = vmatmul.bf16.gmra.mxu0 %v235
    %v927 = vpop.f32.mrf.mxu0
    %v928 = vadd.f32 %v904, %v927
    %v929 = vpop.f32.mrf.mxu0
    %v930 = vadd.f32 %v906, %v929
    %931 = vmatmul.bf16.gmra.mxu0 %v241
    %v932 = vpop.f32.mrf.mxu0
    %v933 = vadd.f32 %v909, %v932
    %v934 = vpop.f32.mrf.mxu0
    %v935 = vadd.f32 %v911, %v934
    %936 = vmatmul.bf16.gmra.mxu0 %v247
    %v937 = vpop.f32.mrf.mxu0
    %v938 = vadd.f32 %v914, %v937
    %v939 = vpop.f32.mrf.mxu0
    %v940 = vadd.f32 %v916, %v939
    %941 = vdwg.mxu0
    %942 = vmatpush.bf16.msra.mxu0 %v605
    %943 = vmatpush.bf16.msra.mxu0 %v603
    %944 = vmatpush.bf16.msra.mxu0 %v601
    %945 = vmatpush.bf16.msra.mxu0 %v599
    %946 = vmatpush.bf16.msra.mxu0 %v597
    %947 = vmatpush.bf16.msra.mxu0 %v595
    %948 = vmatpush.bf16.msra.mxu0 %v593
    %949 = vmatpush.bf16.msra.mxu0 %v591
    %950 = vmatmul.bf16.gmra.mxu0 %v236
    %v951 = vpop.f32.mrf.mxu0
    %v952 = vadd.f32 %v928, %v951
    %v953 = vpop.f32.mrf.mxu0
    %v954 = vadd.f32 %v930, %v953
    %955 = vmatmul.bf16.gmra.mxu0 %v242
    %v956 = vpop.f32.mrf.mxu0
    %v957 = vadd.f32 %v933, %v956
    %v958 = vpop.f32.mrf.mxu0
    %v959 = vadd.f32 %v935, %v958
    %960 = vmatmul.bf16.gmra.mxu0 %v248
    %v961 = vpop.f32.mrf.mxu0
    %v962 = vadd.f32 %v938, %v961
    %v963 = vpop.f32.mrf.mxu0
    %v964 = vadd.f32 %v940, %v963
    %965 = vdwg.mxu0
    %966 = vmatpush.bf16.msra.mxu0 %v621
    %967 = vmatpush.bf16.msra.mxu0 %v619
    %968 = vmatpush.bf16.msra.mxu0 %v617
    %969 = vmatpush.bf16.msra.mxu0 %v615
    %970 = vmatpush.bf16.msra.mxu0 %v613
    %971 = vmatpush.bf16.msra.mxu0 %v611
    %972 = vmatpush.bf16.msra.mxu0 %v609
    %973 = vmatpush.bf16.msra.mxu0 %v607
    %974 = vmatmul.bf16.gmra.mxu0 %v237
    %v975 = vpop.f32.mrf.mxu0
    %v976 = vadd.f32 %v952, %v975
    %v977 = vpop.f32.mrf.mxu0
    %v978 = vadd.f32 %v954, %v977
    %979 = vmatmul.bf16.gmra.mxu0 %v243
    %v980 = vpop.f32.mrf.mxu0
    %v981 = vadd.f32 %v957, %v980
    %v982 = vpop.f32.mrf.mxu0
    %v983 = vadd.f32 %v959, %v982
    %984 = vmatmul.bf16.gmra.mxu0 %v249
    %v985 = vpop.f32.mrf.mxu0
    %v986 = vadd.f32 %v962, %v985
    %v987 = vpop.f32.mrf.mxu0
    %v988 = vadd.f32 %v964, %v987
    %989 = vdwg.mxu0
    %990 = vmatpush.bf16.msra.mxu0 %v637
    %991 = vmatpush.bf16.msra.mxu0 %v635
    %992 = vmatpush.bf16.msra.mxu0 %v633
    %993 = vmatpush.bf16.msra.mxu0 %v631
    %994 = vmatpush.bf16.msra.mxu0 %v629
    %995 = vmatpush.bf16.msra.mxu0 %v627
    %996 = vmatpush.bf16.msra.mxu0 %v625
    %997 = vmatpush.bf16.msra.mxu0 %v623
    %998 = vmatmul.bf16.gmra.mxu0 %v238
    %v999 = vpop.f32.mrf.mxu0
    %v1000 = vadd.f32 %v976, %v999
    %v1001 = vpop.f32.mrf.mxu0
    %v1002 = vadd.f32 %v978, %v1001
    %1003 = vmatmul.bf16.gmra.mxu0 %v244
    %v1004 = vpop.f32.mrf.mxu0
    %v1005 = vadd.f32 %v981, %v1004
    %v1006 = vpop.f32.mrf.mxu0
    %v1007 = vadd.f32 %v983, %v1006
    %1008 = vmatmul.bf16.gmra.mxu0 %v250
    %v1009 = vpop.f32.mrf.mxu0
    %v1010 = vadd.f32 %v986, %v1009
    %v1011 = vpop.f32.mrf.mxu0
    %v1012 = vadd.f32 %v988, %v1011
    %1013 = vdwg.mxu0
    %1014 = vmatpush.bf16.msra.mxu0 %v653
    %1015 = vmatpush.bf16.msra.mxu0 %v651
    %1016 = vmatpush.bf16.msra.mxu0 %v649
    %1017 = vmatpush.bf16.msra.mxu0 %v647
    %1018 = vmatpush.bf16.msra.mxu0 %v645
    %1019 = vmatpush.bf16.msra.mxu0 %v643
    %1020 = vmatpush.bf16.msra.mxu0 %v641
    %1021 = vmatpush.bf16.msra.mxu0 %v639
    %1022 = vmatmul.bf16.gmra.mxu0 %v239
    %v1023 = vpop.f32.mrf.mxu0
    %v1024 = vadd.f32 %v1000, %v1023
    %v1025 = vpop.f32.mrf.mxu0
    %v1026 = vadd.f32 %v1002, %v1025
    %1027 = vmatmul.bf16.gmra.mxu0 %v245
    %v1028 = vpop.f32.mrf.mxu0
    %v1029 = vadd.f32 %v1005, %v1028
    %v1030 = vpop.f32.mrf.mxu0
    %v1031 = vadd.f32 %v1007, %v1030
    %1032 = vmatmul.bf16.gmra.mxu0 %v251
    %v1033 = vpop.f32.mrf.mxu0
    %v1034 = vadd.f32 %v1010, %v1033
    %v1035 = vpop.f32.mrf.mxu0
    %v1036 = vadd.f32 %v1012, %v1035
    %1037 = vdwg.mxu0
    %v1038 = vpack.c.bf16 %v1024, %v880
    %v1039 = vpack.c.bf16 %v1026, %v882
    %v1040 = vpack.c.bf16 %v1029, %v885
    %v1041 = vpack.c.bf16 %v1031, %v887
    %v1042 = vpack.c.bf16 %v1034, %v890
    %v1043 = vpack.c.bf16 %v1036, %v892
    %1044 = vst [vmem:[#allocation8] sm:$0xff] %v1038
    %1045 = vst [vmem:[#allocation8 + $0x8] sm:$0xff] %v1039
    %1046 = vst [vmem:[#allocation8 + $0x10] sm:$0xff] %v1040
    %1047 = vst [vmem:[#allocation8 + $0x18] sm:$0xff] %v1041
    %1048 = vst [vmem:[#allocation8 + $0x20] sm:$0xff] %v1042
    %1049 = vst [vmem:[#allocation8 + $0x28] sm:$0xff] %v1043
    // Predicated region
    $region26: #{tpu_custom_call.1} parent=1 // pred_check
      _
    $region27: #{tpu_custom_call.1} parent=1 // pred_check_branch
      %1051 = sbr.rel (0) target = $region29
    $region28: #{tpu_custom_call.1} parent=1 // pred_region
      %1053 = vsyncadd [#allocation4], 0
      %s1054 = sshll.u32 [#allocation8], 4
      %s1055 = int_to_ptr.vmem [resolvable:$true] %s1054
      %s1056 = sshll.u32 %s3, 4
      %s1057 = int_to_ptr.hbm [resolvable:$true] %s1056
      %1062 = dma.vmem_to_hbm [thread:$0]  %s1055, 768, %s1057, [#allocation4], 128, 128, 8
    $region29: #{tpu_custom_call.1} parent=1 // pred_fallthru
      _
    // Predicated region
    $region30: #{tpu_custom_call.1} parent=1 // pred_check
      _
    $region31: #{tpu_custom_call.1} parent=1 // pred_check_branch
      %1064 = sbr.rel (0) target = $region33
    $region32: #{tpu_custom_call.1} parent=1 // pred_region
      %1066 = dma.done [#allocation4], 768
    $region33: #{tpu_custom_call.1} parent=1 // pred_fallthru
      _
    %1067 = vsyncpa [#allocation3], 1
    %1068 = vsyncpa [#allocation6], 1
    %1069 = vsyncpa [#allocation4], 1

</llo_original>
